<compile_context>
chip_gen: v5e
topology: v5e:2x2
jax: 0.10.0
libtpu: 0.0.40
codegen_flags: <defaults>
</compile_context>

<pallas_src>
import functools

import jax
import jax.numpy as jnp
from jax.experimental import pallas as pl
from jax.experimental.pallas import tpu as pltpu

BN_EPS = 1e-5  # nn.BatchNorm2d default eps


def _round_up(x, m):
    return (x + m - 1) // m * m


# ---------------------------------------------------------------------------
# Phase 1: conv (implicit GEMM on space-to-depth input) + BN stat accumulation
# ---------------------------------------------------------------------------
def _phase1_kernel(x_ref, w_ref, y_ref, sum_ref, ssq_ref, *, ho, wo, c4):
    # x_ref : (Hb, Wb, 4*Cin)   f32   one padded, space-to-depth image
    # w_ref : (4, 4*Cin, Cpad)  bf16  conv weight, one group per (dh, dw) shift
    # y_ref : (Ho*Wo, Cpad)     f32   conv output for this image
    # sum_ref / ssq_ref : (1, Cpad) f32 accumulators, resident across the grid.
    acc = None
    for g, (dh, dw) in enumerate(((0, 0), (0, 1), (1, 0), (1, 1))):
        slab = (
            x_ref[dh:dh + ho, dw:dw + wo, :]       # static shifted slab
            .reshape(ho * wo, c4)                  # leading-dim collapse only
            .astype(jnp.bfloat16)
        )
        part = jnp.dot(slab, w_ref[g], preferred_element_type=jnp.float32)
        acc = part if acc is None else acc + part

    y_ref[...] = acc

    img_sum = jnp.sum(acc, axis=0, keepdims=True)
    img_ssq = jnp.sum(acc * acc, axis=0, keepdims=True)

    @pl.when(pl.program_id(0) == 0)
    def _init():
        sum_ref[...] = img_sum
        ssq_ref[...] = img_ssq

    @pl.when(pl.program_id(0) > 0)
    def _accumulate():
        sum_ref[...] += img_sum
        ssq_ref[...] += img_ssq


# ---------------------------------------------------------------------------
# Phase 2: y -> scale*y + shift -> ReLU (BN affine folded into one FMA)
# ---------------------------------------------------------------------------
def _phase2_kernel(y_ref, scale_ref, shift_ref, o_ref):
    o_ref[...] = jnp.maximum(y_ref[...] * scale_ref[...] + shift_ref[...], 0.0)


def conv3x3_bn_relu(x_nchw, weight_oihw, gamma, beta, stride=2):
    """Forward of Conv3x3: conv3x3(stride=2, pad=1, no bias) -> BN(train) -> ReLU."""
    assert stride == 2, "kernel implements the module's default stride=2"
    # TODO(synk): a stride=1 path would use plain shifted-slab implicit GEMM
    # (no space-to-depth) — not needed for this module's default config.
    n, cin, h, w = x_nchw.shape
    cout = weight_oihw.shape[0]

    ho = (h - 1) // 2 + 1
    wo = (w - 1) // 2 + 1
    hb, wb = ho + 1, wo + 1            # space-to-depth block rows / cols
    c4 = 4 * cin
    cpad = _round_up(cout, 128)        # lane-dense output channels
    m = n * ho * wo

    # --- wrapper glue (layout only): NCHW -> NHWC, zero-pad, space-to-depth ---
    # TODO(synk): the NCHW<->NHWC transposes could be dropped if the surrounding
    # model produced / consumed NHWC activations.
    x_nhwc = jnp.transpose(x_nchw, (0, 2, 3, 1)).astype(jnp.float32)
    xp = jnp.pad(x_nhwc, ((0, 0), (1, 2 * hb - h - 1), (1, 2 * wb - w - 1), (0, 0)))
    x_s2d = (
        xp.reshape(n, hb, 2, wb, 2, cin)
        .transpose(0, 1, 3, 2, 4, 5)               # (n, hb, wb, a, b, cin)
        .reshape(n, hb, wb, c4)
    )

    # Weight (Cout, Cin, 3, 3) -> (4, 4*Cin, Cpad); group g = 2*dh + dw, and the
    # within-group channel order (a, b, cin) matches the s2d channel order.
    w_khw = jnp.transpose(weight_oihw, (2, 3, 1, 0)).astype(jnp.float32)  # (3,3,Cin,Cout)
    w_pad = jnp.pad(w_khw, ((0, 1), (0, 1), (0, 0), (0, cpad - cout)))    # (4,4,Cin,Cpad)
    w_grp = (
        w_pad.reshape(2, 2, 2, 2, cin, cpad)       # (dh, a, dw, b, Cin, Cpad)
        .transpose(0, 2, 1, 3, 4, 5)               # (dh, dw, a, b, Cin, Cpad)
        .reshape(4, c4, cpad)
        .astype(jnp.bfloat16)
    )

    # --- phase 1: conv + per-channel sum / sum-of-squares --------------------
    # TODO(synk): for very large spatial sizes add H-tiling of the per-image
    # block; one image is assumed to fit VMEM here.
    kernel1 = functools.partial(_phase1_kernel, ho=ho, wo=wo, c4=c4)
    y, ch_sum, ch_ssq = pl.pallas_call(
        kernel1,
        grid=(n,),
        in_specs=[
            pl.BlockSpec((None, hb, wb, c4), lambda i: (i, 0, 0, 0)),
            pl.BlockSpec((4, c4, cpad), lambda i: (0, 0, 0)),
        ],
        out_specs=[
            pl.BlockSpec((None, ho * wo, cpad), lambda i: (i, 0, 0)),
            pl.BlockSpec((1, cpad), lambda i: (0, 0)),
            pl.BlockSpec((1, cpad), lambda i: (0, 0)),
        ],
        out_shape=[
            jax.ShapeDtypeStruct((n, ho * wo, cpad), jnp.float32),
            jax.ShapeDtypeStruct((1, cpad), jnp.float32),
            jax.ShapeDtypeStruct((1, cpad), jnp.float32),
        ],
        compiler_params=pltpu.CompilerParams(
            dimension_semantics=("arbitrary",),        # stats accumulate serially
        ),
        cost_estimate=pl.CostEstimate(
            flops=2 * m * (4 * c4) * cpad,
            transcendentals=0,
            bytes_accessed=n * hb * wb * c4 * 4 + 4 * c4 * cpad * 2
                           + m * cpad * 4 + 2 * cpad * 4,
        ),
    )(x_s2d, w_grp)

    # --- fold BN into one per-channel scale/shift (tiny, plain JAX) ----------
    # TODO(synk): running_mean / running_var momentum updates are a training
    # side effect of nn.BatchNorm2d that is not part of the returned forward.
    mean = ch_sum / m
    var = jnp.maximum(ch_ssq / m - mean * mean, 0.0)   # clamp: cancellation guard
    inv = jax.lax.rsqrt(var + BN_EPS)
    gamma_p = jnp.pad(gamma.astype(jnp.float32).reshape(1, cout),
                      ((0, 0), (0, cpad - cout)))
    beta_p = jnp.pad(beta.astype(jnp.float32).reshape(1, cout),
                     ((0, 0), (0, cpad - cout)))
    scale = gamma_p * inv
    shift = beta_p - mean * scale

    # --- phase 2: normalize + ReLU, tiled over M, parallel across cores ------
    y_flat = y.reshape(m, cpad)
    tm = m if m <= 512 else 512
    out_flat = pl.pallas_call(
        _phase2_kernel,
        grid=(pl.cdiv(m, tm),),
        in_specs=[
            pl.BlockSpec((tm, cpad), lambda i: (i, 0)),
            pl.BlockSpec((1, cpad), lambda i: (0, 0)),
            pl.BlockSpec((1, cpad), lambda i: (0, 0)),
        ],
        out_specs=pl.BlockSpec((tm, cpad), lambda i: (i, 0)),
        out_shape=jax.ShapeDtypeStruct((m, cpad), jnp.float32),
        compiler_params=pltpu.CompilerParams(
            dimension_semantics=("parallel",),         # megacore
        ),
        cost_estimate=pl.CostEstimate(
            flops=2 * m * cpad,
            transcendentals=0,
            bytes_accessed=2 * m * cpad * 4 + 2 * cpad * 4,
        ),
    )(y_flat, scale, shift)

    out = out_flat.reshape(n, ho, wo, cpad)[..., :cout]
    return jnp.transpose(out, (0, 3, 1, 2))            # back to NCHW


if __name__ == "__main__":
    key = jax.random.PRNGKey(0)
    k_x, k_w, k_g, k_b = jax.random.split(key, 4)

    N, Cin, H, W = 2, 4, 16, 16
    planes = 8      # Cout
    stride = 2

    x = jax.random.normal(k_x, (N, Cin, H, W), dtype=jnp.float32)
    weight = 0.1 * jax.random.normal(k_w, (planes, Cin, 3, 3), dtype=jnp.float32)
    gamma = 1.0 + 0.1 * jax.random.normal(k_g, (planes,), dtype=jnp.float32)
    beta = 0.1 * jax.random.normal(k_b, (planes,), dtype=jnp.float32)

    out = jax.jit(conv3x3_bn_relu)(x, weight, gamma, beta)
    jax.block_until_ready(out)
    assert out.shape == (N, planes, H // stride, W // stride), out.shape

    # Sanity check vs. an f32 XLA reference (conv -> training-mode BN -> ReLU).
    conv_ref = jax.lax.conv_general_dilated(
        x, weight, window_strides=(2, 2), padding=((1, 1), (1, 1)),
        dimension_numbers=("NCHW", "OIHW", "NCHW"),
        precision=jax.lax.Precision.HIGHEST)
    mu = jnp.mean(conv_ref, axis=(0, 2, 3), keepdims=True)
    vr = jnp.var(conv_ref, axis=(0, 2, 3), keepdims=True)
    ref = jnp.maximum(
        (conv_ref - mu) * jax.lax.rsqrt(vr + BN_EPS)
        * gamma.reshape(1, -1, 1, 1) + beta.reshape(1, -1, 1, 1), 0.0)
    err = float(jnp.max(jnp.abs(out - ref)))
    assert err < 5e-2, f"max abs error vs reference too large: {err}"

    print("KERNEL_OK")
</pallas_src>

<mosaic_0001>
module attributes {stable_mosaic.version = 11 : i64} {
  func.func @_phase2_kernel(%arg0: i32, %arg1: memref<128x128xf32, #tpu.memory_space<vmem>>, %arg2: memref<1x128xf32, #tpu.memory_space<vmem>>, %arg3: memref<1x128xf32, #tpu.memory_space<vmem>>, %arg4: memref<128x128xf32, #tpu.memory_space<vmem>>) attributes {dimension_semantics = [#tpu.dimension_semantics<parallel>], iteration_bounds = array<i64: 1>, scalar_prefetch = 0 : i64, scratch_operands = 0 : i64, tpu.core_type = #tpu.core_type<tc>, window_params = [{transform_indices = @transform_0, window_bounds = array<i64: 128, 128>}, {pipeline_mode = #tpu.pipeline_mode<synchronous>, transform_indices = @transform_1, window_bounds = array<i64: 1, 128>}, {pipeline_mode = #tpu.pipeline_mode<synchronous>, transform_indices = @transform_2, window_bounds = array<i64: 1, 128>}, {transform_indices = @transform_3, window_bounds = array<i64: 128, 128>}]} {
    %c0 = arith.constant 0 : index
    %c0_0 = arith.constant 0 : index
    %0 = vector.load %arg1[%c0, %c0_0] : memref<128x128xf32, #tpu.memory_space<vmem>>, vector<128x128xf32>
    %c0_1 = arith.constant 0 : index
    %c0_2 = arith.constant 0 : index
    %1 = vector.load %arg2[%c0_1, %c0_2] : memref<1x128xf32, #tpu.memory_space<vmem>>, vector<1x128xf32>
    %2 = vector.broadcast %1 : vector<1x128xf32> to vector<128x128xf32>
    %3 = arith.mulf %0, %2 : vector<128x128xf32>
    %c0_3 = arith.constant 0 : index
    %c0_4 = arith.constant 0 : index
    %4 = vector.load %arg3[%c0_3, %c0_4] : memref<1x128xf32, #tpu.memory_space<vmem>>, vector<1x128xf32>
    %5 = vector.broadcast %4 : vector<1x128xf32> to vector<128x128xf32>
    %6 = arith.addf %3, %5 : vector<128x128xf32>
    %cst = arith.constant 0.000000e+00 : f32
    %7 = vector.broadcast %cst : f32 to vector<128x128xf32>
    %8 = arith.maximumf %6, %7 : vector<128x128xf32>
    %c0_5 = arith.constant 0 : index
    %c0_6 = arith.constant 0 : index
    %9 = vector.load %arg4[%c0_5, %c0_6] : memref<128x128xf32, #tpu.memory_space<vmem>>, vector<128x128xf32>
    tpu.vector_store %arg4[%c0_5, %c0_6], %8 {strides = array<i32>} : memref<128x128xf32, #tpu.memory_space<vmem>>, vector<128x128xf32>,
    return
  }
  func.func @transform_0(%arg0: i32) -> (i32, i32) {
    %c0_i32 = arith.constant 0 : i32
    %c0_i32_0 = arith.constant 0 : i32
    return %arg0, %c0_i32 : i32, i32
  }
  func.func @transform_1(%arg0: i32) -> (i32, i32) {
    %c0_i32 = arith.constant 0 : i32
    %c0_i32_0 = arith.constant 0 : i32
    %c0_i32_1 = arith.constant 0 : i32
    return %c0_i32, %c0_i32_0 : i32, i32
  }
  func.func @transform_2(%arg0: i32) -> (i32, i32) {
    %c0_i32 = arith.constant 0 : i32
    %c0_i32_0 = arith.constant 0 : i32
    %c0_i32_1 = arith.constant 0 : i32
    return %c0_i32, %c0_i32_0 : i32, i32
  }
  func.func @transform_3(%arg0: i32) -> (i32, i32) {
    %c0_i32 = arith.constant 0 : i32
    %c0_i32_0 = arith.constant 0 : i32
    return %arg0, %c0_i32 : i32, i32
  }
}

module attributes {stable_mosaic.version = 11 : i64} {
  func.func @_phase1_kernel(%arg0: i32, %arg1: memref<1x9x9x16xf32, #tpu.memory_space<vmem>>, %arg2: memref<4x16x128xbf16, #tpu.memory_space<vmem>>, %arg3: memref<1x64x128xf32, #tpu.memory_space<vmem>>, %arg4: memref<1x128xf32, #tpu.memory_space<vmem>>, %arg5: memref<1x128xf32, #tpu.memory_space<vmem>>) attributes {dimension_semantics = [#tpu.dimension_semantics<arbitrary>], iteration_bounds = array<i64: 2>, scalar_prefetch = 0 : i64, scratch_operands = 0 : i64, tpu.core_type = #tpu.core_type<tc>, window_params = [{transform_indices = @transform_0, window_bounds = array<i64: 1, 9, 9, 16>}, {pipeline_mode = #tpu.pipeline_mode<synchronous>, transform_indices = @transform_1, window_bounds = array<i64: 4, 16, 128>}, {transform_indices = @transform_2, window_bounds = array<i64: 1, 64, 128>}, {pipeline_mode = #tpu.pipeline_mode<synchronous>, transform_indices = @transform_3, window_bounds = array<i64: 1, 128>}, {pipeline_mode = #tpu.pipeline_mode<synchronous>, transform_indices = @transform_4, window_bounds = array<i64: 1, 128>}]} {
    %c0 = arith.constant 0 : index
    %c0_0 = arith.constant 0 : index
    %c0_1 = arith.constant 0 : index
    %c0_2 = arith.constant 0 : index
    %0 = vector.load %arg1[%c0, %c0_0, %c0_1, %c0_2] : memref<1x9x9x16xf32, #tpu.memory_space<vmem>>, vector<1x8x8x16xf32>
    %1 = vector.shape_cast %0 : vector<1x8x8x16xf32> to vector<8x8x16xf32>
    %2 = vector.shape_cast %1 : vector<8x8x16xf32> to vector<64x16xf32>
    %3 = arith.truncf %2 : vector<64x16xf32> to vector<64x16xbf16>
    %c0_3 = arith.constant 0 : index
    %c0_4 = arith.constant 0 : index
    %c0_5 = arith.constant 0 : index
    %4 = vector.load %arg2[%c0_3, %c0_4, %c0_5] : memref<4x16x128xbf16, #tpu.memory_space<vmem>>, vector<1x16x128xbf16>
    %5 = vector.shape_cast %4 : vector<1x16x128xbf16> to vector<16x128xbf16>
    %cst = arith.constant dense<0.000000e+00> : vector<64x128xf32>
    %6 = tpu.matmul %3, %5, %cst {dimension_numbers = #tpu.dot_dimension_numbers<[1], [0], [0], [1], [0, 0, 1, 1], [], []>} : vector<64x16xbf16>, vector<16x128xbf16>, vector<64x128xf32> -> vector<64x128xf32>
    %c0_6 = arith.constant 0 : index
    %c0_7 = arith.constant 0 : index
    %c1 = arith.constant 1 : index
    %c0_8 = arith.constant 0 : index
    %7 = vector.load %arg1[%c0_6, %c0_7, %c1, %c0_8] : memref<1x9x9x16xf32, #tpu.memory_space<vmem>>, vector<1x8x8x16xf32>
    %8 = vector.shape_cast %7 : vector<1x8x8x16xf32> to vector<8x8x16xf32>
    %9 = vector.shape_cast %8 : vector<8x8x16xf32> to vector<64x16xf32>
    %10 = arith.truncf %9 : vector<64x16xf32> to vector<64x16xbf16>
    %c1_9 = arith.constant 1 : index
    %c0_10 = arith.constant 0 : index
    %c0_11 = arith.constant 0 : index
    %11 = vector.load %arg2[%c1_9, %c0_10, %c0_11] : memref<4x16x128xbf16, #tpu.memory_space<vmem>>, vector<1x16x128xbf16>
    %12 = vector.shape_cast %11 : vector<1x16x128xbf16> to vector<16x128xbf16>
    %cst_12 = arith.constant dense<0.000000e+00> : vector<64x128xf32>
    %13 = tpu.matmul %10, %12, %cst_12 {dimension_numbers = #tpu.dot_dimension_numbers<[1], [0], [0], [1], [0, 0, 1, 1], [], []>} : vector<64x16xbf16>, vector<16x128xbf16>, vector<64x128xf32> -> vector<64x128xf32>
    %14 = arith.addf %6, %13 : vector<64x128xf32>
    %c0_13 = arith.constant 0 : index
    %c1_14 = arith.constant 1 : index
    %c0_15 = arith.constant 0 : index
    %c0_16 = arith.constant 0 : index
    %15 = vector.load %arg1[%c0_13, %c1_14, %c0_15, %c0_16] : memref<1x9x9x16xf32, #tpu.memory_space<vmem>>, vector<1x8x8x16xf32>
    %16 = vector.shape_cast %15 : vector<1x8x8x16xf32> to vector<8x8x16xf32>
    %17 = vector.shape_cast %16 : vector<8x8x16xf32> to vector<64x16xf32>
    %18 = arith.truncf %17 : vector<64x16xf32> to vector<64x16xbf16>
    %c2 = arith.constant 2 : index
    %c0_17 = arith.constant 0 : index
    %c0_18 = arith.constant 0 : index
    %19 = vector.load %arg2[%c2, %c0_17, %c0_18] : memref<4x16x128xbf16, #tpu.memory_space<vmem>>, vector<1x16x128xbf16>
    %20 = vector.shape_cast %19 : vector<1x16x128xbf16> to vector<16x128xbf16>
    %cst_19 = arith.constant dense<0.000000e+00> : vector<64x128xf32>
    %21 = tpu.matmul %18, %20, %cst_19 {dimension_numbers = #tpu.dot_dimension_numbers<[1], [0], [0], [1], [0, 0, 1, 1], [], []>} : vector<64x16xbf16>, vector<16x128xbf16>, vector<64x128xf32> -> vector<64x128xf32>
    %22 = arith.addf %14, %21 : vector<64x128xf32>
    %c0_20 = arith.constant 0 : index
    %c1_21 = arith.constant 1 : index
    %c1_22 = arith.constant 1 : index
    %c0_23 = arith.constant 0 : index
    %23 = vector.load %arg1[%c0_20, %c1_21, %c1_22, %c0_23] : memref<1x9x9x16xf32, #tpu.memory_space<vmem>>, vector<1x8x8x16xf32>
    %24 = vector.shape_cast %23 : vector<1x8x8x16xf32> to vector<8x8x16xf32>
    %25 = vector.shape_cast %24 : vector<8x8x16xf32> to vector<64x16xf32>
    %26 = arith.truncf %25 : vector<64x16xf32> to vector<64x16xbf16>
    %c3 = arith.constant 3 : index
    %c0_24 = arith.constant 0 : index
    %c0_25 = arith.constant 0 : index
    %27 = vector.load %arg2[%c3, %c0_24, %c0_25] : memref<4x16x128xbf16, #tpu.memory_space<vmem>>, vector<1x16x128xbf16>
    %28 = vector.shape_cast %27 : vector<1x16x128xbf16> to vector<16x128xbf16>
    %cst_26 = arith.constant dense<0.000000e+00> : vector<64x128xf32>
    %29 = tpu.matmul %26, %28, %cst_26 {dimension_numbers = #tpu.dot_dimension_numbers<[1], [0], [0], [1], [0, 0, 1, 1], [], []>} : vector<64x16xbf16>, vector<16x128xbf16>, vector<64x128xf32> -> vector<64x128xf32>
    %30 = arith.addf %22, %29 : vector<64x128xf32>
    %c0_27 = arith.constant 0 : index
    %c0_28 = arith.constant 0 : index
    %c0_29 = arith.constant 0 : index
    %31 = vector.load %arg3[%c0_27, %c0_28, %c0_29] : memref<1x64x128xf32, #tpu.memory_space<vmem>>, vector<1x64x128xf32>
    %32 = vector.shape_cast %31 : vector<1x64x128xf32> to vector<64x128xf32>
    %33 = vector.shape_cast %30 : vector<64x128xf32> to vector<1x64x128xf32>
    tpu.vector_store %arg3[%c0_27, %c0_28, %c0_29], %33 {strides = array<i32>} : memref<1x64x128xf32, #tpu.memory_space<vmem>>, vector<1x64x128xf32>,
    %cst_30 = arith.constant dense<0.000000e+00> : vector<128xf32>
    %34 = vector.multi_reduction <add>, %30, %cst_30 [0] : vector<64x128xf32> to vector<128xf32>
    %35 = vector.shape_cast %34 : vector<128xf32> to vector<1x128xf32>
    %36 = arith.mulf %30, %30 : vector<64x128xf32>
    %cst_31 = arith.constant dense<0.000000e+00> : vector<128xf32>
    %37 = vector.multi_reduction <add>, %36, %cst_31 [0] : vector<64x128xf32> to vector<128xf32>
    %38 = vector.shape_cast %37 : vector<128xf32> to vector<1x128xf32>
    %c0_i32 = arith.constant 0 : i32
    %39 = arith.cmpi eq, %arg0, %c0_i32 : i32
    %40 = arith.extui %39 : i1 to i32
    %c0_i32_32 = arith.constant 0 : i32
    %41 = arith.cmpi ne, %40, %c0_i32_32 : i32
    scf.if %41 {
      %c0_35 = arith.constant 0 : index
      %c0_36 = arith.constant 0 : index
      %45 = vector.load %arg4[%c0_35, %c0_36] : memref<1x128xf32, #tpu.memory_space<vmem>>, vector<1x128xf32>
      tpu.vector_store %arg4[%c0_35, %c0_36], %35 {strides = array<i32>} : memref<1x128xf32, #tpu.memory_space<vmem>>, vector<1x128xf32>,
      %c0_37 = arith.constant 0 : index
      %c0_38 = arith.constant 0 : index
      %46 = vector.load %arg5[%c0_37, %c0_38] : memref<1x128xf32, #tpu.memory_space<vmem>>, vector<1x128xf32>
      tpu.vector_store %arg5[%c0_37, %c0_38], %38 {strides = array<i32>} : memref<1x128xf32, #tpu.memory_space<vmem>>, vector<1x128xf32>,
    } else {
    }
    %c0_i32_33 = arith.constant 0 : i32
    %42 = arith.cmpi sgt, %arg0, %c0_i32_33 : i32
    %43 = arith.extui %42 : i1 to i32
    %c0_i32_34 = arith.constant 0 : i32
    %44 = arith.cmpi ne, %43, %c0_i32_34 : i32
    scf.if %44 {
      %c0_35 = arith.constant 0 : index
      %c0_36 = arith.constant 0 : index
      %45 = vector.load %arg4[%c0_35, %c0_36] : memref<1x128xf32, #tpu.memory_space<vmem>>, vector<1x128xf32>
      %46 = arith.addf %45, %35 : vector<1x128xf32>
      %c0_37 = arith.constant 0 : index
      %c0_38 = arith.constant 0 : index
      %47 = vector.load %arg4[%c0_37, %c0_38] : memref<1x128xf32, #tpu.memory_space<vmem>>, vector<1x128xf32>
      tpu.vector_store %arg4[%c0_37, %c0_38], %46 {strides = array<i32>} : memref<1x128xf32, #tpu.memory_space<vmem>>, vector<1x128xf32>,
      %c0_39 = arith.constant 0 : index
      %c0_40 = arith.constant 0 : index
      %48 = vector.load %arg5[%c0_39, %c0_40] : memref<1x128xf32, #tpu.memory_space<vmem>>, vector<1x128xf32>
      %49 = arith.addf %48, %38 : vector<1x128xf32>
      %c0_41 = arith.constant 0 : index
      %c0_42 = arith.constant 0 : index
      %50 = vector.load %arg5[%c0_41, %c0_42] : memref<1x128xf32, #tpu.memory_space<vmem>>, vector<1x128xf32>
      tpu.vector_store %arg5[%c0_41, %c0_42], %49 {strides = array<i32>} : memref<1x128xf32, #tpu.memory_space<vmem>>, vector<1x128xf32>,
    } else {
    }
    return
  }
  func.func @transform_0(%arg0: i32) -> (i32, i32, i32, i32) {
    %c0_i32 = arith.constant 0 : i32
    %c0_i32_0 = arith.constant 0 : i32
    %c0_i32_1 = arith.constant 0 : i32
    %c0_i32_2 = arith.constant 0 : i32
    return %arg0, %c0_i32, %c0_i32_0, %c0_i32_1 : i32, i32, i32, i32
  }
  func.func @transform_1(%arg0: i32) -> (i32, i32, i32) {
    %c0_i32 = arith.constant 0 : i32
    %c0_i32_0 = arith.constant 0 : i32
    %c0_i32_1 = arith.constant 0 : i32
    %c0_i32_2 = arith.constant 0 : i32
    return %c0_i32, %c0_i32_0, %c0_i32_1 : i32, i32, i32
  }
  func.func @transform_2(%arg0: i32) -> (i32, i32, i32) {
    %c0_i32 = arith.constant 0 : i32
    %c0_i32_0 = arith.constant 0 : i32
    %c0_i32_1 = arith.constant 0 : i32
    return %arg0, %c0_i32, %c0_i32_0 : i32, i32, i32
  }
  func.func @transform_3(%arg0: i32) -> (i32, i32) {
    %c0_i32 = arith.constant 0 : i32
    %c0_i32_0 = arith.constant 0 : i32
    %c0_i32_1 = arith.constant 0 : i32
    return %c0_i32, %c0_i32_0 : i32, i32
  }
  func.func @transform_4(%arg0: i32) -> (i32, i32) {
    %c0_i32 = arith.constant 0 : i32
    %c0_i32_0 = arith.constant 0 : i32
    %c0_i32_1 = arith.constant 0 : i32
    return %c0_i32, %c0_i32_0 : i32, i32
  }
}

</mosaic_0001>

<llo_original>
// kernel: conv3x3_bn_relu.3
$region0: #{conv3x3_bn_relu.3}
  #allocation0 [shape = 'u32[]', space=smem, size = 0x4, offset = 0x4, fixed_abs, tag = 'smem constant byte address 0x4 - core index']
  #allocation1 [shape = 'u32[72,128]{1,0:T(1,128)}', space=vmem, size = 0x9000, scoped, tag = 'internal scratch']
  %s0 = inlined_call_operand.vmem [shape: f32[128,128], index: 0, kind: input, shape index: {}]
  %s1 = inlined_call_operand.vmem [shape: f32[1,128], index: 1, kind: input, shape index: {}]
  %s2 = inlined_call_operand.vmem [shape: f32[1,128], index: 2, kind: input, shape index: {}]
  %s3 = inlined_call_operand.vmem [shape: f32[128,128], index: 3, kind: output, shape index: {}]
  %s4 = sld [smem:[#allocation0]]
  $region22: #{conv3x3_bn_relu.3} parent=0
    _
  %s6 = ssub.s32 1, %s4
  %s7 = scalar_select 0, %s6, %s4
  // Predicated region
  $region2: #{conv3x3_bn_relu.3} parent=0 // pred_check
    _
  $region3: #{conv3x3_bn_relu.3} parent=0 // pred_check_branch
    %9 = sbr.rel (0) target = $region5
  $region4: #{conv3x3_bn_relu.3} parent=0 // pred_region
    _
  $region5: #{conv3x3_bn_relu.3} parent=0 // pred_fallthru
    _
  // Predicated region
  $region6: #{conv3x3_bn_relu.3} parent=0 // pred_check
    _
  $region7: #{conv3x3_bn_relu.3} parent=0 // pred_check_branch
    %11 = sbr.rel (0) target = $region9
  $region8: #{conv3x3_bn_relu.3} parent=0 // pred_region
    _
  $region9: #{conv3x3_bn_relu.3} parent=0 // pred_fallthru
    _
  // Predicated region
  $region10: #{conv3x3_bn_relu.3} parent=0 // pred_check
    _
  $region11: #{conv3x3_bn_relu.3} parent=0 // pred_check_branch
    %13 = sbr.rel (0) target = $region13
  $region12: #{conv3x3_bn_relu.3} parent=0 // pred_region
    _
  $region13: #{conv3x3_bn_relu.3} parent=0 // pred_fallthru
    _
  %v14 = vld [vmem:[%s0] sm:$0xff]
  %v15 = vld [vmem:[%s0 + $0x8] sm:$0xff]
  %v16 = vld [vmem:[%s0 + $0x10] sm:$0xff]
  %v17 = vld [vmem:[%s0 + $0x18] sm:$0xff]
  %v18 = vld [vmem:[%s0 + $0x20] sm:$0xff]
  %v19 = vld [vmem:[%s0 + $0x28] sm:$0xff]
  %v20 = vld [vmem:[%s0 + $0x30] sm:$0xff]
  %v21 = vld [vmem:[%s0 + $0x38] sm:$0xff]
  %v22 = vld [vmem:[%s0 + $0x40] sm:$0xff]
  %v23 = vld [vmem:[%s0 + $0x48] sm:$0xff]
  %v24 = vld [vmem:[%s0 + $0x50] sm:$0xff]
  %v25 = vld [vmem:[%s0 + $0x58] sm:$0xff]
  %v26 = vld [vmem:[%s0 + $0x60] sm:$0xff]
  %v27 = vld [vmem:[%s0 + $0x68] sm:$0xff]
  %v28 = vld [vmem:[%s0 + $0x70] sm:$0xff]
  %v29 = vld [vmem:[%s0 + $0x78] sm:$0xff]
  %v30 = vld [vmem:[%s1] sm:$0x1]
  %v32 = vperm.slane %v30, 0
  %v34 = vmul.f32 %v14, %v32
  %v35 = vmul.f32 %v15, %v32
  %v36 = vmul.f32 %v16, %v32
  %v37 = vmul.f32 %v17, %v32
  %v38 = vmul.f32 %v18, %v32
  %v39 = vmul.f32 %v19, %v32
  %v40 = vmul.f32 %v20, %v32
  %v41 = vmul.f32 %v21, %v32
  %v42 = vmul.f32 %v22, %v32
  %v43 = vmul.f32 %v23, %v32
  %v44 = vmul.f32 %v24, %v32
  %v45 = vmul.f32 %v25, %v32
  %v46 = vmul.f32 %v26, %v32
  %v47 = vmul.f32 %v27, %v32
  %v48 = vmul.f32 %v28, %v32
  %v49 = vmul.f32 %v29, %v32
  %v50 = vld [vmem:[%s2] sm:$0x1]
  %v52 = vperm.slane %v50, 0
  %v54 = vadd.f32 %v34, %v52
  %v55 = vadd.f32 %v35, %v52
  %v56 = vadd.f32 %v36, %v52
  %v57 = vadd.f32 %v37, %v52
  %v58 = vadd.f32 %v38, %v52
  %v59 = vadd.f32 %v39, %v52
  %v60 = vadd.f32 %v40, %v52
  %v61 = vadd.f32 %v41, %v52
  %v62 = vadd.f32 %v42, %v52
  %v63 = vadd.f32 %v43, %v52
  %v64 = vadd.f32 %v44, %v52
  %v65 = vadd.f32 %v45, %v52
  %v66 = vadd.f32 %v46, %v52
  %v67 = vadd.f32 %v47, %v52
  %v68 = vadd.f32 %v48, %v52
  %v69 = vadd.f32 %v49, %v52
  %v70 = vmax.f32 %v54, 0.0
  %v71 = vmax.f32 %v55, 0.0
  %v72 = vmax.f32 %v56, 0.0
  %v73 = vmax.f32 %v57, 0.0
  %v74 = vmax.f32 %v58, 0.0
  %v75 = vmax.f32 %v59, 0.0
  %v76 = vmax.f32 %v60, 0.0
  %v77 = vmax.f32 %v61, 0.0
  %v78 = vmax.f32 %v62, 0.0
  %v79 = vmax.f32 %v63, 0.0
  %v80 = vmax.f32 %v64, 0.0
  %v81 = vmax.f32 %v65, 0.0
  %v82 = vmax.f32 %v66, 0.0
  %v83 = vmax.f32 %v67, 0.0
  %v84 = vmax.f32 %v68, 0.0
  %v85 = vmax.f32 %v69, 0.0
  %86 = vst [vmem:[%s3] sm:$0xff] %v70
  %87 = vst [vmem:[%s3 + $0x8] sm:$0xff] %v71
  %88 = vst [vmem:[%s3 + $0x10] sm:$0xff] %v72
  %89 = vst [vmem:[%s3 + $0x18] sm:$0xff] %v73
  %90 = vst [vmem:[%s3 + $0x20] sm:$0xff] %v74
  %91 = vst [vmem:[%s3 + $0x28] sm:$0xff] %v75
  %92 = vst [vmem:[%s3 + $0x30] sm:$0xff] %v76
  %93 = vst [vmem:[%s3 + $0x38] sm:$0xff] %v77
  %94 = vst [vmem:[%s3 + $0x40] sm:$0xff] %v78
  %95 = vst [vmem:[%s3 + $0x48] sm:$0xff] %v79
  %96 = vst [vmem:[%s3 + $0x50] sm:$0xff] %v80
  %97 = vst [vmem:[%s3 + $0x58] sm:$0xff] %v81
  %98 = vst [vmem:[%s3 + $0x60] sm:$0xff] %v82
  %99 = vst [vmem:[%s3 + $0x68] sm:$0xff] %v83
  %100 = vst [vmem:[%s3 + $0x70] sm:$0xff] %v84
  %101 = vst [vmem:[%s3 + $0x78] sm:$0xff] %v85
  // Predicated region
  $region14: #{conv3x3_bn_relu.3} parent=0 // pred_check
    _
  $region15: #{conv3x3_bn_relu.3} parent=0 // pred_check_branch
    %103 = sbr.rel (0) target = $region17
  $region16: #{conv3x3_bn_relu.3} parent=0 // pred_region
    _
  $region17: #{conv3x3_bn_relu.3} parent=0 // pred_fallthru
    _
  // Predicated region
  $region18: #{conv3x3_bn_relu.3} parent=0 // pred_check
    _
  $region19: #{conv3x3_bn_relu.3} parent=0 // pred_check_branch
    %105 = sbr.rel (0) target = $region21
  $region20: #{conv3x3_bn_relu.3} parent=0 // pred_region
    _
  $region21: #{conv3x3_bn_relu.3} parent=0 // pred_fallthru
    _

// kernel: conv3x3_bn_relu.2
$region0: #{conv3x3_bn_relu.2}
  #allocation0 [shape = 'u32[]', space=smem, size = 0x4, offset = 0x4, fixed_abs, tag = 'smem constant byte address 0x4 - core index']
  #allocation1 [shape = 'u32[72,128]{1,0:T(1,128)}', space=vmem, size = 0x9000, scoped, tag = 'internal scratch']
  %s0 = inlined_call_operand.vmem [shape: f32[2,9,9,16], index: 0, kind: input, shape index: {}]
  %s1 = inlined_call_operand.vmem [shape: bf16[4,16,128], index: 1, kind: input, shape index: {}]
  %s2 = inlined_call_operand.vmem [shape: f32[2,64,128], index: 2, kind: output, shape index: {0}]
  %s3 = inlined_call_operand.vmem [shape: f32[1,128], index: 3, kind: output, shape index: {1}]
  %s4 = inlined_call_operand.vmem [shape: f32[1,128], index: 4, kind: output, shape index: {2}]
  %5 = xla_tuple %s2, %s3, %s4
  %s6 = sld [smem:[#allocation0]]
  $region65: #{conv3x3_bn_relu.2} parent=0
    _
  %s8 = ssub.s32 1, %s6
  %s9 = scalar_select 0, %s8, %s6
  loop: start=0, step=1, limit=4
  $region2: #{conv3x3_bn_relu.2} parent=0 // loop_pre_header
    _
  $region3: #{conv3x3_bn_relu.2} parent=0 // loop_header
    %s11 = sphi 0, %s15
    %p12 = scmp.ge.s32.totalorder %s11, 4
    %s21 = sphi 0, %s23
    %s24 = sphi 0, %s21
    %s25 = sphi 0, %s24
    %s41 = sphi 0, %s25
    %s45 = sphi 0, %s45
    %s47 = sphi 0, %s45
    %s48 = sphi 0, %s47
    %s62 = sphi 0, %s48
    %s68 = sphi 0, %s70
    %s71 = sphi 0, %s68
    %s72 = sphi 0, %s71
    %s88 = sphi 0, %s72
    %s92 = sphi 0, %s92
    %s94 = sphi 0, %s92
    %s95 = sphi 0, %s94
    %s109 = sphi 0, %s95
    %s113 = sphi 0, %s113
    %s115 = sphi 0, %s113
    %s116 = sphi 0, %s115
    %s130 = sphi 0, %s116
  $region4: #{conv3x3_bn_relu.2} parent=0 // loop_header_branch
    %14 = sbr.rel (%p12) target = $region8
  $region5: #{conv3x3_bn_relu.2} parent=0 // loop_body
    %s16 = ssub.s32 %s11, 1
    %s17 = ssub.s32 %s11, 2
    %s18 = sadd.s32 %s11, 1
    %s19 = ssub.s32 %s11, %s18
    %p20 = scmp.eq.s32.totalorder %s19, 0
    %s22 = sadd.s32 %s21, 1
    %s23 = scalar_select %p20, %s21, %s22
    %p26 = pneg %p20
    %p27 = scmp.eq.s32.totalorder %s11, 1
    %p28 = por %p26, %p27
    %p29 = scmp.ne.s32.totalorder %s21, %s24
    %p30 = scmp.eq.s32.totalorder %s11, 0
    %p31 = por %p29, %p30
    %p32 = scmp.ne.s32.totalorder %s21, %s24
    %p33 = scmp.eq.s32.totalorder %s16, 1
    %p34 = por %p32, %p33
    %p35 = scmp.ne.s32.totalorder %s24, %s25
    %p36 = scmp.eq.s32.totalorder %s16, 0
    %p37 = por %p35, %p36
    %p38 = scmp.ne.s32.totalorder %s24, %s25
    %p39 = scmp.eq.s32.totalorder %s17, 1
    %p40 = por %p38, %p39
    %p42 = scmp.ne.s32.totalorder %s25, %s41
    %p43 = scmp.eq.s32.totalorder %s17, 0
    %p44 = por %p42, %p43
    %s46 = sadd.s32 %s45, 1
    %p49 = scmp.eq.s32.totalorder %s11, 1
    %p50 = scmp.ne.s32.totalorder %s45, %s47
    %p51 = scmp.eq.s32.totalorder %s11, 0
    %p52 = por %p50, %p51
    %p53 = scmp.ne.s32.totalorder %s45, %s47
    %p54 = scmp.eq.s32.totalorder %s16, 1
    %p55 = por %p53, %p54
    %p56 = scmp.ne.s32.totalorder %s47, %s48
    %p57 = scmp.eq.s32.totalorder %s16, 0
    %p58 = por %p56, %p57
    %p59 = scmp.ne.s32.totalorder %s47, %s48
    %p60 = scmp.eq.s32.totalorder %s17, 1
    %p61 = por %p59, %p60
    %p63 = scmp.ne.s32.totalorder %s48, %s62
    %p64 = scmp.eq.s32.totalorder %s17, 0
    %p65 = por %p63, %p64
    %s66 = ssub.s32 %s11, %s18
    %p67 = scmp.eq.s32.totalorder %s66, 0
    %s69 = sadd.s32 %s68, 1
    %s70 = scalar_select %p67, %s68, %s69
    %p73 = pneg %p67
    %p74 = scmp.eq.s32.totalorder %s11, 1
    %p75 = por %p73, %p74
    %p76 = scmp.ne.s32.totalorder %s68, %s71
    %p77 = scmp.eq.s32.totalorder %s11, 0
    %p78 = por %p76, %p77
    %p79 = scmp.ne.s32.totalorder %s68, %s71
    %p80 = scmp.eq.s32.totalorder %s16, 1
    %p81 = por %p79, %p80
    %p82 = scmp.ne.s32.totalorder %s71, %s72
    %p83 = scmp.eq.s32.totalorder %s16, 0
    %p84 = por %p82, %p83
    %p85 = scmp.ne.s32.totalorder %s71, %s72
    %p86 = scmp.eq.s32.totalorder %s17, 1
    %p87 = por %p85, %p86
    %p89 = scmp.ne.s32.totalorder %s72, %s88
    %p90 = scmp.eq.s32.totalorder %s17, 0
    %p91 = por %p89, %p90
    %s93 = sadd.s32 %s92, 1
    %p96 = scmp.eq.s32.totalorder %s11, 1
    %p97 = scmp.ne.s32.totalorder %s92, %s94
    %p98 = scmp.eq.s32.totalorder %s11, 0
    %p99 = por %p97, %p98
    %p100 = scmp.ne.s32.totalorder %s92, %s94
    %p101 = scmp.eq.s32.totalorder %s16, 1
    %p102 = por %p100, %p101
    %p103 = scmp.ne.s32.totalorder %s94, %s95
    %p104 = scmp.eq.s32.totalorder %s16, 0
    %p105 = por %p103, %p104
    %p106 = scmp.ne.s32.totalorder %s94, %s95
    %p107 = scmp.eq.s32.totalorder %s17, 1
    %p108 = por %p106, %p107
    %p110 = scmp.ne.s32.totalorder %s95, %s109
    %p111 = scmp.eq.s32.totalorder %s17, 0
    %p112 = por %p110, %p111
    %s114 = sadd.s32 %s113, 1
    %p117 = scmp.eq.s32.totalorder %s11, 1
    %p118 = scmp.ne.s32.totalorder %s113, %s115
    %p119 = scmp.eq.s32.totalorder %s11, 0
    %p120 = por %p118, %p119
    %p121 = scmp.ne.s32.totalorder %s113, %s115
    %p122 = scmp.eq.s32.totalorder %s16, 1
    %p123 = por %p121, %p122
    %p124 = scmp.ne.s32.totalorder %s115, %s116
    %p125 = scmp.eq.s32.totalorder %s16, 0
    %p126 = por %p124, %p125
    %p127 = scmp.ne.s32.totalorder %s115, %s116
    %p128 = scmp.eq.s32.totalorder %s17, 1
    %p129 = por %p127, %p128
    %p131 = scmp.ne.s32.totalorder %s116, %s130
    %p132 = scmp.eq.s32.totalorder %s17, 0
    %p133 = por %p131, %p132
    %p134 = scmp.le.s32.totalorder 1, %s11
    %p135 = scmp.lt.s32.totalorder %s11, 3
    %p136 = pnand %p134, %p135
    %p137 = pneg %p136
    // Predicated region
    $region9: #{conv3x3_bn_relu.2} parent=5 // pred_check
      _
    $region10: #{conv3x3_bn_relu.2} parent=5 // pred_check_branch
      %139 = sbr.rel (%p136) target = $region12
    $region11: #{conv3x3_bn_relu.2} parent=5 // pred_region
      %s140 = ssub.s32 %s11, 1
      // Predicated region
      $region13: #{conv3x3_bn_relu.2} parent=11 // pred_check
        %p141 = pneg %p58
      $region14: #{conv3x3_bn_relu.2} parent=11 // pred_check_branch
        %143 = sbr.rel (%p141) target = $region16
      $region15: #{conv3x3_bn_relu.2} parent=11 // pred_region
        _
      $region16: #{conv3x3_bn_relu.2} parent=11 // pred_fallthru
        _
    $region12: #{conv3x3_bn_relu.2} parent=5 // pred_fallthru
      _
    %p144 = scmp.lt.s32.totalorder %s11, 2
    // Predicated region
    $region17: #{conv3x3_bn_relu.2} parent=5 // pred_check
      %p145 = pneg %p144
    $region18: #{conv3x3_bn_relu.2} parent=5 // pred_check_branch
      %147 = sbr.rel (%p145) target = $region20
    $region19: #{conv3x3_bn_relu.2} parent=5 // pred_region
      // Predicated region
      $region21: #{conv3x3_bn_relu.2} parent=19 // pred_check
        %p148 = pneg %p31
      $region22: #{conv3x3_bn_relu.2} parent=19 // pred_check_branch
        %150 = sbr.rel (%p148) target = $region24
      $region23: #{conv3x3_bn_relu.2} parent=19 // pred_region
        %p151 = scmp.lt.s32.totalorder %s11, 1
        %s152 = scalar_select %p151, %s11, 1
        %s153 = smul.addr %s152, 18
        %s154 = smul.addr %s153, 8
        %s155 = scalar_lea.vmem %s0, %s154
      $region24: #{conv3x3_bn_relu.2} parent=19 // pred_fallthru
        _
    $region20: #{conv3x3_bn_relu.2} parent=5 // pred_fallthru
      _
    %p156 = scmp.le.s32.totalorder 1, %s11
    %p157 = scmp.lt.s32.totalorder %s11, 3
    %p158 = pnand %p156, %p157
    %p159 = pneg %p158
    // Predicated region
    $region25: #{conv3x3_bn_relu.2} parent=5 // pred_check
      _
    $region26: #{conv3x3_bn_relu.2} parent=5 // pred_check_branch
      %161 = sbr.rel (%p158) target = $region28
    $region27: #{conv3x3_bn_relu.2} parent=5 // pred_region
      %s162 = ssub.s32 %s11, 1
      %p163 = scmp.lt.s32.totalorder %s16, 1
      %s164 = scalar_select %p163, %s16, 1
      %s165 = smul.addr %s164, 18
      %s166 = smul.addr %s165, 8
      %s167 = scalar_lea.vmem %s0, %s166
      %p168 = pneg %p37
      %p169 = pneg %p34
      %p170 = pneg %p58
      %p171 = pneg %p55
      %p172 = pneg %p84
      %p173 = pneg %p81
      %p174 = scmp.lt.s32.totalorder %s16, 1
      %s175 = scalar_select %p174, %s16, 1
      %s176 = smul.addr %s175, 8
      %s177 = smul.addr %s176, 8
      %s178 = scalar_lea.vmem %s2, %s177
      %p179 = pneg %p105
      %p180 = pneg %p102
      %p181 = pneg %p126
      %p182 = pneg %p123
      %p183 = scmp.lt.s32.totalorder %s16, 1
      %s184 = scalar_select %p183, %s16, 1
      %s185 = smul.addr %s184, 18
      %s186 = smul.addr %s185, 8
      %s187 = scalar_lea.vmem %s0, %s186
      %p188 = scmp.lt.s32.totalorder %s16, 1
      %s189 = scalar_select %p188, %s16, 1
      %s190 = smul.addr %s189, 8
      %s191 = smul.addr %s190, 8
      %s192 = scalar_lea.vmem %s2, %s191
      %v194 = vld [vmem:[%s187] sm:$0xff]
      %v195 = vld [vmem:[%s187 + $0x10] sm:$0xff]
      %v196 = vld [vmem:[%s187 + $0x20] sm:$0xff]
      %v197 = vld [vmem:[%s187 + $0x30] sm:$0xff]
      %v198 = vld [vmem:[%s187 + $0x40] sm:$0xff]
      %v199 = vld [vmem:[%s187 + $0x50] sm:$0xff]
      %v200 = vld [vmem:[%s187 + $0x60] sm:$0xff]
      %v201 = vld [vmem:[%s187 + $0x70] sm:$0xff]
      %v202 = vpack.c.bf16 %v195, %v194
      %v203 = vpack.c.bf16 %v197, %v196
      %v204 = vpack.c.bf16 %v199, %v198
      %v205 = vpack.c.bf16 %v201, %v200
      %v206 = vld [vmem:[%s1] sm:$0xf]
      %v207 = vld [vmem:[%s1 + $0x4] sm:$0xf]
      %v208 = vld [vmem:[%s187 + $0x1] sm:$0xff]
      %v209 = vld [vmem:[%s187 + $0x11] sm:$0xff]
      %v210 = vld [vmem:[%s187 + $0x21] sm:$0xff]
      %v211 = vld [vmem:[%s187 + $0x31] sm:$0xff]
      %v212 = vld [vmem:[%s187 + $0x41] sm:$0xff]
      %v213 = vld [vmem:[%s187 + $0x51] sm:$0xff]
      %v214 = vld [vmem:[%s187 + $0x61] sm:$0xff]
      %v215 = vld [vmem:[%s187 + $0x71] sm:$0xff]
      %v216 = vpack.c.bf16 %v209, %v208
      %v217 = vpack.c.bf16 %v211, %v210
      %v218 = vpack.c.bf16 %v213, %v212
      %v219 = vpack.c.bf16 %v215, %v214
      %s220 = scalar_lea.vmem %s1, 8
      %v221 = vld [vmem:[%s220] sm:$0xf]
      %v222 = vld [vmem:[%s220 + $0x4] sm:$0xf]
      %v225 = vunpack.c.l.b16 %v221
      %v226 = vunpack.c.l.b16 %v222
      %v227 = vpack.c.b16 %v226, %v225
      %vm229 = vcmask 130048
      %v231 = vsel %vm229, %v216, 0
      %v234 = vsel %vm229, %v217, 0
      %v237 = vsel %vm229, %v218, 0
      %v240 = vsel %vm229, %v219, 0
      %242 = vmatpush.bf16.msra.mxu0 0
      %243 = vmatpush.bf16.msra.mxu0 0
      %244 = vmatpush.bf16.msra.mxu0 0
      %245 = vmatpush.bf16.msra.mxu0 0
      %246 = vmatpush.bf16.msra.mxu0 0
      %247 = vmatpush.bf16.msra.mxu0 0
      %248 = vmatpush.bf16.msra.mxu0 0
      %249 = vmatpush.bf16.msra.mxu0 %v227
      %250 = vmatmul.bf16.gmra.mxu0 %v231
      %v251 = vpop.f32.mrf.mxu0
      %v252 = vadd.f32 0.0, %v251
      %v253 = vpop.f32.mrf.mxu0
      %v254 = vadd.f32 0.0, %v253
      %255 = vmatmul.bf16.gmra.mxu0 %v234
      %v256 = vpop.f32.mrf.mxu0
      %v257 = vadd.f32 0.0, %v256
      %v258 = vpop.f32.mrf.mxu0
      %v259 = vadd.f32 0.0, %v258
      %260 = vmatmul.bf16.gmra.mxu0 %v237
      %v261 = vpop.f32.mrf.mxu0
      %v262 = vadd.f32 0.0, %v261
      %v263 = vpop.f32.mrf.mxu0
      %v264 = vadd.f32 0.0, %v263
      %265 = vmatmul.bf16.gmra.mxu0 %v240
      %v266 = vpop.f32.mrf.mxu0
      %v267 = vadd.f32 0.0, %v266
      %v268 = vpop.f32.mrf.mxu0
      %v269 = vadd.f32 0.0, %v268
      %270 = vdwg.mxu0
      %v273 = vunpack.c.l.b16 %v206
      %v274 = vunpack.c.l.b16 %v207
      %v275 = vpack.c.b16 %v274, %v273
      %v278 = vsel %vm229, %v202, 0
      %v281 = vsel %vm229, %v203, 0
      %v284 = vsel %vm229, %v204, 0
      %v287 = vsel %vm229, %v205, 0
      %289 = vmatpush.bf16.msra.mxu0 0
      %290 = vmatpush.bf16.msra.mxu0 0
      %291 = vmatpush.bf16.msra.mxu0 0
      %292 = vmatpush.bf16.msra.mxu0 0
      %293 = vmatpush.bf16.msra.mxu0 0
      %294 = vmatpush.bf16.msra.mxu0 0
      %295 = vmatpush.bf16.msra.mxu0 0
      %296 = vmatpush.bf16.msra.mxu0 %v275
      %297 = vmatmul.bf16.gmra.mxu0 %v278
      %v298 = vpop.f32.mrf.mxu0
      %v299 = vadd.f32 %v252, %v298
      %v300 = vpop.f32.mrf.mxu0
      %v301 = vadd.f32 %v254, %v300
      %302 = vmatmul.bf16.gmra.mxu0 %v281
      %v303 = vpop.f32.mrf.mxu0
      %v304 = vadd.f32 %v257, %v303
      %v305 = vpop.f32.mrf.mxu0
      %v306 = vadd.f32 %v259, %v305
      %307 = vmatmul.bf16.gmra.mxu0 %v284
      %v308 = vpop.f32.mrf.mxu0
      %v309 = vadd.f32 %v262, %v308
      %v310 = vpop.f32.mrf.mxu0
      %v311 = vadd.f32 %v264, %v310
      %312 = vmatmul.bf16.gmra.mxu0 %v287
      %v313 = vpop.f32.mrf.mxu0
      %v314 = vadd.f32 %v267, %v313
      %v315 = vpop.f32.mrf.mxu0
      %v316 = vadd.f32 %v269, %v315
      %317 = vdwg.mxu0
      %s318 = scalar_lea.vmem %s187, 16
      %v319 = vld [vmem:[%s318] sm:$0xff]
      %v320 = vld [vmem:[%s318 + $0x10] sm:$0xff]
      %v321 = vld [vmem:[%s318 + $0x20] sm:$0xff]
      %v322 = vld [vmem:[%s318 + $0x30] sm:$0xff]
      %v323 = vld [vmem:[%s318 + $0x40] sm:$0xff]
      %v324 = vld [vmem:[%s318 + $0x50] sm:$0xff]
      %v325 = vld [vmem:[%s318 + $0x60] sm:$0xff]
      %v326 = vld [vmem:[%s318 + $0x70] sm:$0xff]
      %v327 = vpack.c.bf16 %v320, %v319
      %v328 = vpack.c.bf16 %v322, %v321
      %v329 = vpack.c.bf16 %v324, %v323
      %v330 = vpack.c.bf16 %v326, %v325
      %s331 = scalar_lea.vmem %s1, 16
      %v332 = vld [vmem:[%s331] sm:$0xf]
      %v333 = vld [vmem:[%s331 + $0x4] sm:$0xf]
      %v336 = vunpack.c.l.b16 %v332
      %v337 = vunpack.c.l.b16 %v333
      %v338 = vpack.c.b16 %v337, %v336
      %v341 = vsel %vm229, %v327, 0
      %v344 = vsel %vm229, %v328, 0
      %v347 = vsel %vm229, %v329, 0
      %v350 = vsel %vm229, %v330, 0
      %352 = vmatpush.bf16.msra.mxu0 0
      %353 = vmatpush.bf16.msra.mxu0 0
      %354 = vmatpush.bf16.msra.mxu0 0
      %355 = vmatpush.bf16.msra.mxu0 0
      %356 = vmatpush.bf16.msra.mxu0 0
      %357 = vmatpush.bf16.msra.mxu0 0
      %358 = vmatpush.bf16.msra.mxu0 0
      %359 = vmatpush.bf16.msra.mxu0 %v338
      %360 = vmatmul.bf16.gmra.mxu0 %v341
      %v361 = vpop.f32.mrf.mxu0
      %v362 = vadd.f32 0.0, %v361
      %v363 = vpop.f32.mrf.mxu0
      %v364 = vadd.f32 0.0, %v363
      %365 = vmatmul.bf16.gmra.mxu0 %v344
      %v366 = vpop.f32.mrf.mxu0
      %v367 = vadd.f32 0.0, %v366
      %v368 = vpop.f32.mrf.mxu0
      %v369 = vadd.f32 0.0, %v368
      %370 = vmatmul.bf16.gmra.mxu0 %v347
      %v371 = vpop.f32.mrf.mxu0
      %v372 = vadd.f32 0.0, %v371
      %v373 = vpop.f32.mrf.mxu0
      %v374 = vadd.f32 0.0, %v373
      %375 = vmatmul.bf16.gmra.mxu0 %v350
      %v376 = vpop.f32.mrf.mxu0
      %v377 = vadd.f32 0.0, %v376
      %v378 = vpop.f32.mrf.mxu0
      %v379 = vadd.f32 0.0, %v378
      %380 = vdwg.mxu0
      %v381 = vadd.f32 %v299, %v362
      %v382 = vadd.f32 %v301, %v364
      %v383 = vadd.f32 %v304, %v367
      %v384 = vadd.f32 %v306, %v369
      %v385 = vadd.f32 %v309, %v372
      %v386 = vadd.f32 %v311, %v374
      %v387 = vadd.f32 %v314, %v377
      %v388 = vadd.f32 %v316, %v379
      %v389 = vld [vmem:[%s318 + $0x1] sm:$0xff]
      %v390 = vld [vmem:[%s318 + $0x11] sm:$0xff]
      %v391 = vld [vmem:[%s318 + $0x21] sm:$0xff]
      %v392 = vld [vmem:[%s318 + $0x31] sm:$0xff]
      %v393 = vld [vmem:[%s318 + $0x41] sm:$0xff]
      %v394 = vld [vmem:[%s318 + $0x51] sm:$0xff]
      %v395 = vld [vmem:[%s318 + $0x61] sm:$0xff]
      %v396 = vld [vmem:[%s318 + $0x71] sm:$0xff]
      %v397 = vpack.c.bf16 %v390, %v389
      %v398 = vpack.c.bf16 %v392, %v391
      %v399 = vpack.c.bf16 %v394, %v393
      %v400 = vpack.c.bf16 %v396, %v395
      %s401 = scalar_lea.vmem %s1, 24
      %v402 = vld [vmem:[%s401] sm:$0xf]
      %v403 = vld [vmem:[%s401 + $0x4] sm:$0xf]
      %v406 = vunpack.c.l.b16 %v402
      %v407 = vunpack.c.l.b16 %v403
      %v408 = vpack.c.b16 %v407, %v406
      %v411 = vsel %vm229, %v397, 0
      %v414 = vsel %vm229, %v398, 0
      %v417 = vsel %vm229, %v399, 0
      %v420 = vsel %vm229, %v400, 0
      %422 = vmatpush.bf16.msra.mxu0 0
      %423 = vmatpush.bf16.msra.mxu0 0
      %424 = vmatpush.bf16.msra.mxu0 0
      %425 = vmatpush.bf16.msra.mxu0 0
      %426 = vmatpush.bf16.msra.mxu0 0
      %427 = vmatpush.bf16.msra.mxu0 0
      %428 = vmatpush.bf16.msra.mxu0 0
      %429 = vmatpush.bf16.msra.mxu0 %v408
      %430 = vmatmul.bf16.gmra.mxu0 %v411
      %v431 = vpop.f32.mrf.mxu0
      %v432 = vadd.f32 0.0, %v431
      %v433 = vpop.f32.mrf.mxu0
      %v434 = vadd.f32 0.0, %v433
      %435 = vmatmul.bf16.gmra.mxu0 %v414
      %v436 = vpop.f32.mrf.mxu0
      %v437 = vadd.f32 0.0, %v436
      %v438 = vpop.f32.mrf.mxu0
      %v439 = vadd.f32 0.0, %v438
      %440 = vmatmul.bf16.gmra.mxu0 %v417
      %v441 = vpop.f32.mrf.mxu0
      %v442 = vadd.f32 0.0, %v441
      %v443 = vpop.f32.mrf.mxu0
      %v444 = vadd.f32 0.0, %v443
      %445 = vmatmul.bf16.gmra.mxu0 %v420
      %v446 = vpop.f32.mrf.mxu0
      %v447 = vadd.f32 0.0, %v446
      %v448 = vpop.f32.mrf.mxu0
      %v449 = vadd.f32 0.0, %v448
      %450 = vdwg.mxu0
      %v451 = vadd.f32 %v381, %v432
      %v452 = vadd.f32 %v382, %v434
      %v453 = vadd.f32 %v383, %v437
      %v454 = vadd.f32 %v384, %v439
      %v455 = vadd.f32 %v385, %v442
      %v456 = vadd.f32 %v386, %v444
      %v457 = vadd.f32 %v387, %v447
      %v458 = vadd.f32 %v388, %v449
      %459 = vst [vmem:[%s192] sm:$0xff] %v451
      %460 = vst [vmem:[%s192 + $0x8] sm:$0xff] %v452
      %461 = vst [vmem:[%s192 + $0x10] sm:$0xff] %v453
      %462 = vst [vmem:[%s192 + $0x18] sm:$0xff] %v454
      %463 = vst [vmem:[%s192 + $0x20] sm:$0xff] %v455
      %464 = vst [vmem:[%s192 + $0x28] sm:$0xff] %v456
      %465 = vst [vmem:[%s192 + $0x30] sm:$0xff] %v457
      %466 = vst [vmem:[%s192 + $0x38] sm:$0xff] %v458
      %v467 = vadd.f32 %v451, %v452
      %v468 = vadd.f32 %v467, %v453
      %v469 = vadd.f32 %v468, %v454
      %v470 = vadd.f32 %v469, %v455
      %v471 = vadd.f32 %v470, %v456
      %v472 = vadd.f32 %v471, %v457
      %v473 = vadd.f32 %v472, %v458
      %v474 = vrot.slane %v473, 4
      %v475 = vadd.f32 %v473, %v474
      %v476 = vrot.slane %v475, 2
      %v477 = vadd.f32 %v475, %v476
      %v478 = vrot.slane %v477, 1
      %v479 = vadd.f32 %v477, %v478
      %v480 = vmul.f32 %v451, %v451
      %v481 = vmul.f32 %v452, %v452
      %v482 = vmul.f32 %v453, %v453
      %v483 = vmul.f32 %v454, %v454
      %v484 = vmul.f32 %v455, %v455
      %v485 = vmul.f32 %v456, %v456
      %v486 = vmul.f32 %v457, %v457
      %v487 = vmul.f32 %v458, %v458
      %v488 = vadd.f32 %v480, %v481
      %v489 = vadd.f32 %v488, %v482
      %v490 = vadd.f32 %v489, %v483
      %v491 = vadd.f32 %v490, %v484
      %v492 = vadd.f32 %v491, %v485
      %v493 = vadd.f32 %v492, %v486
      %v494 = vadd.f32 %v493, %v487
      %v495 = vrot.slane %v494, 4
      %v496 = vadd.f32 %v494, %v495
      %v497 = vrot.slane %v496, 2
      %v498 = vadd.f32 %v496, %v497
      %v499 = vrot.slane %v498, 1
      %v500 = vadd.f32 %v498, %v499
      %p501 = scmp.eq.s32.totalorder %s16, 0
      // Predicated region
      $region29: #{conv3x3_bn_relu.2} parent=27 // pred_check
        %p502 = pneg %p501
      $region30: #{conv3x3_bn_relu.2} parent=27 // pred_check_branch
        %504 = sbr.rel (%p502) target = $region32
      $region31: #{conv3x3_bn_relu.2} parent=27 // pred_region
        %505 = vst [vmem:[%s3] sm:$0x1] %v479
        %506 = vst [vmem:[%s4] sm:$0x1] %v500
      $region32: #{conv3x3_bn_relu.2} parent=27 // pred_fallthru
        _
      %p507 = scmp.gt.s32.totalorder %s16, 0
      // Predicated region
      $region33: #{conv3x3_bn_relu.2} parent=27 // pred_check
        %p508 = pneg %p507
      $region34: #{conv3x3_bn_relu.2} parent=27 // pred_check_branch
        %510 = sbr.rel (%p508) target = $region36
      $region35: #{conv3x3_bn_relu.2} parent=27 // pred_region
        %v511 = vld [vmem:[%s3] sm:$0x1]
        %v512 = vadd.f32 %v511, %v479
        %513 = vst [vmem:[%s3] sm:$0x1] %v512
        %v514 = vld [vmem:[%s4] sm:$0x1]
        %v515 = vadd.f32 %v514, %v500
        %516 = vst [vmem:[%s4] sm:$0x1] %v515
      $region36: #{conv3x3_bn_relu.2} parent=27 // pred_fallthru
        _
      %p517 = scmp.lt.s32.totalorder %s16, 1
      %s518 = scalar_select %p517, %s16, 1
      %s519 = smul.addr %s518, 8
      %s520 = smul.addr %s519, 8
      %s521 = scalar_lea.vmem %s2, %s520
      // Predicated region
      $region37: #{conv3x3_bn_relu.2} parent=27 // pred_check
        %p522 = pneg %p81
      $region38: #{conv3x3_bn_relu.2} parent=27 // pred_check_branch
        %524 = sbr.rel (%p522) target = $region40
      $region39: #{conv3x3_bn_relu.2} parent=27 // pred_region
        _
      $region40: #{conv3x3_bn_relu.2} parent=27 // pred_fallthru
        _
      // Predicated region
      $region41: #{conv3x3_bn_relu.2} parent=27 // pred_check
        %p525 = pneg %p102
      $region42: #{conv3x3_bn_relu.2} parent=27 // pred_check_branch
        %527 = sbr.rel (%p525) target = $region44
      $region43: #{conv3x3_bn_relu.2} parent=27 // pred_region
        _
      $region44: #{conv3x3_bn_relu.2} parent=27 // pred_fallthru
        _
      // Predicated region
      $region45: #{conv3x3_bn_relu.2} parent=27 // pred_check
        %p528 = pneg %p123
      $region46: #{conv3x3_bn_relu.2} parent=27 // pred_check_branch
        %530 = sbr.rel (%p528) target = $region48
      $region47: #{conv3x3_bn_relu.2} parent=27 // pred_region
        _
      $region48: #{conv3x3_bn_relu.2} parent=27 // pred_fallthru
        _
      // Predicated region
      $region49: #{conv3x3_bn_relu.2} parent=27 // pred_check
        %p531 = pneg %p102
      $region50: #{conv3x3_bn_relu.2} parent=27 // pred_check_branch
        %533 = sbr.rel (%p531) target = $region52
      $region51: #{conv3x3_bn_relu.2} parent=27 // pred_region
        _
      $region52: #{conv3x3_bn_relu.2} parent=27 // pred_fallthru
        _
      // Predicated region
      $region53: #{conv3x3_bn_relu.2} parent=27 // pred_check
        %p534 = pneg %p123
      $region54: #{conv3x3_bn_relu.2} parent=27 // pred_check_branch
        %536 = sbr.rel (%p534) target = $region56
      $region55: #{conv3x3_bn_relu.2} parent=27 // pred_region
        _
      $region56: #{conv3x3_bn_relu.2} parent=27 // pred_fallthru
        _
    $region28: #{conv3x3_bn_relu.2} parent=5 // pred_fallthru
      _
    %p537 = scmp.le.s32.totalorder 2, %s11
    // Predicated region
    $region57: #{conv3x3_bn_relu.2} parent=5 // pred_check
      %p538 = pneg %p537
    $region58: #{conv3x3_bn_relu.2} parent=5 // pred_check_branch
      %540 = sbr.rel (%p538) target = $region60
    $region59: #{conv3x3_bn_relu.2} parent=5 // pred_region
      %s541 = ssub.s32 %s11, 2
      // Predicated region
      $region61: #{conv3x3_bn_relu.2} parent=59 // pred_check
        %p542 = pneg %p87
      $region62: #{conv3x3_bn_relu.2} parent=59 // pred_check_branch
        %544 = sbr.rel (%p542) target = $region64
      $region63: #{conv3x3_bn_relu.2} parent=59 // pred_region
        %p545 = scmp.lt.s32.totalorder %s17, 1
        %s546 = scalar_select %p545, %s17, 1
        %s547 = smul.addr %s546, 8
        %s548 = smul.addr %s547, 8
        %s549 = scalar_lea.vmem %s2, %s548
      $region64: #{conv3x3_bn_relu.2} parent=59 // pred_fallthru
        _
    $region60: #{conv3x3_bn_relu.2} parent=5 // pred_fallthru
      _
  $region6: #{conv3x3_bn_relu.2} parent=0 // loop_footer
    %s15 = sadd.s32 1, %s11
  $region7: #{conv3x3_bn_relu.2} parent=0 // loop_footer_branch
    %10 = sbr.rel target = $region3
  $region8: #{conv3x3_bn_relu.2} parent=0 // loop_exit
    _

</llo_original>
